<compile_context>
chip_gen: v7x
topology: tpu7x:2x2x1
jax: 0.10.0
libtpu: 0.0.40
codegen_flags: <defaults>
</compile_context>

<pallas_src>
import math
import jax
import jax.numpy as jnp
from jax.experimental import pallas as pl
from jax.experimental.pallas import tpu as pltpu


def _mlp_kernel(x_ref, w1_ref, b1_ref, w2_ref, b2_ref, o_ref):
    # Linear1 + ReLU: bf16 (or f32) MXU matmul with f32 accumulation; bias add / ReLU in f32.
    h = jnp.dot(x_ref[...], w1_ref[...], preferred_element_type=jnp.float32)
    h = jnp.maximum(h + b1_ref[...], 0.0)

    # TODO(synk): nn.Dropout(0.1) is implemented as identity (eval / inference semantics);
    # training-mode dropout would use pltpu.prng_seed + pltpu.stateful_bernoulli.

    # Linear2 + ReLU (h cast back to the streamed weight dtype for the native MXU path).
    y = jnp.dot(h.astype(w2_ref.dtype), w2_ref[...],
                preferred_element_type=jnp.float32)
    o_ref[...] = jnp.maximum(y + b2_ref[...], 0.0).astype(o_ref.dtype)


def _round_up(x, m):
    return ((x + m - 1) // m) * m


def _vmem_capacity_bytes():
    # Conservative fallback = v7x per-TensorCore VMEM (64 MiB).
    try:
        return int(pltpu.get_tpu_info().vmem_capacity_bytes)
    except Exception:
        return 64 * 1024 * 1024


def mlp_forward(x, w1_t, b1, w2_t, b2, *, block_b=512, cast_bf16=True):
    """x: (..., inputdim), w1_t: (inputdim, hidden), b1: (hidden,),
    w2_t: (hidden, outdim), b2: (outdim,) -> (..., outdim).  Weights are the torch
    Linear weights already transposed so the kernel does plain x @ W."""
    din, hidden = w1_t.shape
    dout = w2_t.shape[1]
    out_dtype = x.dtype

    orig_lead = x.shape[:-1]
    x2 = x.reshape(-1, din)
    B = x2.shape[0]

    if cast_bf16:
        # Halve streamed HBM bytes / resident weight VMEM; accumulation stays f32 in-kernel.
        x2 = x2.astype(jnp.bfloat16)
        w1_t = w1_t.astype(jnp.bfloat16)
        w2_t = w2_t.astype(jnp.bfloat16)

    x_bytes = jnp.dtype(x2.dtype).itemsize
    w_bytes = jnp.dtype(w1_t.dtype).itemsize
    o_bytes = jnp.dtype(out_dtype).itemsize

    # Sublane multiple for the batch tile: 16 for bf16-packed rows, 8 for f32.
    sub = 16 if (cast_bf16 or jnp.dtype(out_dtype) == jnp.dtype(jnp.bfloat16)) else 8

    def est_vmem(tb):
        weights = (din * hidden + hidden * dout) * w_bytes   # Buffered(1): one copy each
        biases = (hidden + dout) * 4
        x_tiles = 2 * tb * din * x_bytes                     # double-buffered input stream
        o_tiles = 2 * tb * dout * o_bytes                    # double-buffered output stream
        h_scratch = tb * hidden * 4                          # f32 intermediate
        return weights + biases + x_tiles + o_tiles + h_scratch

    capacity = _vmem_capacity_bytes()
    budget = int(0.6 * capacity)                             # headroom for compiler scratch

    if B <= 256:
        # Overhead-bound regime at small batch: single grid step.
        tb = _round_up(max(B, sub), sub)
    else:
        # At least 2 grid steps so v7x's two TensorCores both get work; cap at block_b.
        tb = min(_round_up(block_b, sub), _round_up((B + 1) // 2, sub))
        # Shrink until the per-step VMEM estimate fits the (chip-dependent) budget.
        while tb > sub and est_vmem(tb) > budget:
            tb = max(sub, ((tb // 2) // sub) * sub)

    n_blocks = (B + tb - 1) // tb
    b_pad = n_blocks * tb
    if b_pad != B:
        x2 = jnp.pad(x2, ((0, b_pad - B), (0, 0)))

    b1_2 = b1.reshape(1, hidden).astype(jnp.float32)
    b2_2 = b2.reshape(1, dout).astype(jnp.float32)

    vmem_limit = int(min(max(1.5 * est_vmem(tb), 32 * 1024 * 1024),
                         capacity, 128 * 1024 * 1024))

    out = pl.pallas_call(
        _mlp_kernel,
        out_shape=jax.ShapeDtypeStruct((b_pad, dout), out_dtype),
        grid=(n_blocks,),
        in_specs=[
            # x: streamed per batch tile (default double-buffering overlaps DMA & compute).
            pl.BlockSpec((tb, din), lambda i: (i, 0)),
            # Weights / biases: constant index_map => VMEM-resident across grid steps;
            # Buffered(1) drops the useless second buffer (halves resident weight VMEM).
            pl.BlockSpec((din, hidden), lambda i: (0, 0), pipeline_mode=pl.Buffered(1)),
            pl.BlockSpec((1, hidden), lambda i: (0, 0), pipeline_mode=pl.Buffered(1)),
            pl.BlockSpec((hidden, dout), lambda i: (0, 0), pipeline_mode=pl.Buffered(1)),
            pl.BlockSpec((1, dout), lambda i: (0, 0), pipeline_mode=pl.Buffered(1)),
        ],
        out_specs=pl.BlockSpec((tb, dout), lambda i: (i, 0)),
        compiler_params=pltpu.CompilerParams(
            dimension_semantics=("parallel",),
            vmem_limit_bytes=vmem_limit),
    )(x2, w1_t, b1_2, w2_t, b2_2)

    out = out[:B]
    return out.reshape(*orig_lead, dout)


def _linear_init(key, fan_in, fan_out):
    # torch.nn.Linear default init: weight kaiming_uniform_(a=sqrt(5)) -> U(-1/sqrt(fan_in), ..),
    # bias U(-1/sqrt(fan_in), 1/sqrt(fan_in)).  Weight returned transposed as (fan_in, fan_out).
    kw, kb = jax.random.split(key)
    bound = 1.0 / math.sqrt(fan_in)
    w_t = jax.random.uniform(kw, (fan_in, fan_out), jnp.float32, -bound, bound)
    b = jax.random.uniform(kb, (fan_out,), jnp.float32, -bound, bound)
    return w_t, b


if __name__ == "__main__":
    # Small, TPU-friendly shapes consistent with the module (dout multiple of 128 keeps the
    # output block lane-dense).
    B = 64
    INPUT_DIM = 32
    HIDDEN_DIM = 64
    OUT_DIM = 128

    key = jax.random.PRNGKey(0)
    k_x, k_l1, k_l2 = jax.random.split(key, 3)

    x = jax.random.normal(k_x, (B, INPUT_DIM), jnp.float32)
    w1_t, b1 = _linear_init(k_l1, INPUT_DIM, HIDDEN_DIM)
    w2_t, b2 = _linear_init(k_l2, HIDDEN_DIM, OUT_DIM)

    y = mlp_forward(x, w1_t, b1, w2_t, b2)           # bf16 streaming, f32 accumulation
    y = jax.block_until_ready(y)

    # Reference matching the kernel's numerics exactly (bf16 inputs/weights, f32 accumulate).
    xb, w1b, w2b = (a.astype(jnp.bfloat16) for a in (x, w1_t, w2_t))
    h_b = jnp.maximum(jnp.dot(xb, w1b, preferred_element_type=jnp.float32) + b1, 0.0)
    y_bf = jnp.maximum(
        jnp.dot(h_b.astype(jnp.bfloat16), w2b, preferred_element_type=jnp.float32) + b2, 0.0)

    # Pure-f32 reference (eval-mode PyTorch MLP: dropout is identity) — loose tolerance
    # accounts for the intentional bf16 streaming path.
    h_ref = jnp.maximum(x @ w1_t + b1, 0.0)
    y_ref = jnp.maximum(h_ref @ w2_t + b2, 0.0)

    assert y.shape == (B, OUT_DIM), y.shape
    assert jnp.allclose(y, y_bf, rtol=2e-3, atol=2e-3), (
        float(jnp.max(jnp.abs(y - y_bf))))
    assert jnp.allclose(y, y_ref, rtol=3e-2, atol=3e-2), (
        float(jnp.max(jnp.abs(y - y_ref))))

    print("KERNEL_OK")
</pallas_src>

<mosaic_0001>
module attributes {stable_mosaic.version = 11 : i64} {
  func.func @_mlp_kernel(%arg0: i32, %arg1: memref<64x32xbf16, #tpu.memory_space<vmem>>, %arg2: memref<32x64xbf16, #tpu.memory_space<vmem>>, %arg3: memref<1x64xf32, #tpu.memory_space<vmem>>, %arg4: memref<64x128xbf16, #tpu.memory_space<vmem>>, %arg5: memref<1x128xf32, #tpu.memory_space<vmem>>, %arg6: memref<64x128xf32, #tpu.memory_space<vmem>>) attributes {dimension_semantics = [#tpu.dimension_semantics<parallel>], iteration_bounds = array<i64: 1>, scalar_prefetch = 0 : i64, scratch_operands = 0 : i64, tpu.core_type = #tpu.core_type<tc>, window_params = [{transform_indices = @transform_0, window_bounds = array<i64: 64, 32>}, {pipeline_mode = #tpu.pipeline_mode<synchronous>, transform_indices = @transform_1, window_bounds = array<i64: 32, 64>}, {pipeline_mode = #tpu.pipeline_mode<synchronous>, transform_indices = @transform_2, window_bounds = array<i64: 1, 64>}, {pipeline_mode = #tpu.pipeline_mode<synchronous>, transform_indices = @transform_3, window_bounds = array<i64: 64, 128>}, {pipeline_mode = #tpu.pipeline_mode<synchronous>, transform_indices = @transform_4, window_bounds = array<i64: 1, 128>}, {transform_indices = @transform_5, window_bounds = array<i64: 64, 128>}]} {
    %c0 = arith.constant 0 : index
    %c0_0 = arith.constant 0 : index
    %0 = vector.load %arg1[%c0, %c0_0] : memref<64x32xbf16, #tpu.memory_space<vmem>>, vector<64x32xbf16>
    %c0_1 = arith.constant 0 : index
    %c0_2 = arith.constant 0 : index
    %1 = vector.load %arg2[%c0_1, %c0_2] : memref<32x64xbf16, #tpu.memory_space<vmem>>, vector<32x64xbf16>
    %cst = arith.constant dense<0.000000e+00> : vector<64x64xf32>
    %2 = tpu.matmul %0, %1, %cst {dimension_numbers = #tpu.dot_dimension_numbers<[1], [0], [0], [1], [0, 0, 1, 1], [], []>} : vector<64x32xbf16>, vector<32x64xbf16>, vector<64x64xf32> -> vector<64x64xf32>
    %c0_3 = arith.constant 0 : index
    %c0_4 = arith.constant 0 : index
    %3 = vector.load %arg3[%c0_3, %c0_4] : memref<1x64xf32, #tpu.memory_space<vmem>>, vector<1x64xf32>
    %4 = vector.broadcast %3 : vector<1x64xf32> to vector<64x64xf32>
    %5 = arith.addf %2, %4 : vector<64x64xf32>
    %cst_5 = arith.constant 0.000000e+00 : f32
    %6 = vector.broadcast %cst_5 : f32 to vector<64x64xf32>
    %7 = arith.maximumf %5, %6 : vector<64x64xf32>
    %8 = arith.truncf %7 : vector<64x64xf32> to vector<64x64xbf16>
    %c0_6 = arith.constant 0 : index
    %c0_7 = arith.constant 0 : index
    %9 = vector.load %arg4[%c0_6, %c0_7] : memref<64x128xbf16, #tpu.memory_space<vmem>>, vector<64x128xbf16>
    %cst_8 = arith.constant dense<0.000000e+00> : vector<64x128xf32>
    %10 = tpu.matmul %8, %9, %cst_8 {dimension_numbers = #tpu.dot_dimension_numbers<[1], [0], [0], [1], [0, 0, 1, 1], [], []>} : vector<64x64xbf16>, vector<64x128xbf16>, vector<64x128xf32> -> vector<64x128xf32>
    %c0_9 = arith.constant 0 : index
    %c0_10 = arith.constant 0 : index
    %11 = vector.load %arg5[%c0_9, %c0_10] : memref<1x128xf32, #tpu.memory_space<vmem>>, vector<1x128xf32>
    %12 = vector.broadcast %11 : vector<1x128xf32> to vector<64x128xf32>
    %13 = arith.addf %10, %12 : vector<64x128xf32>
    %cst_11 = arith.constant 0.000000e+00 : f32
    %14 = vector.broadcast %cst_11 : f32 to vector<64x128xf32>
    %15 = arith.maximumf %13, %14 : vector<64x128xf32>
    %c0_12 = arith.constant 0 : index
    %c0_13 = arith.constant 0 : index
    %16 = vector.load %arg6[%c0_12, %c0_13] : memref<64x128xf32, #tpu.memory_space<vmem>>, vector<64x128xf32>
    tpu.vector_store %arg6[%c0_12, %c0_13], %15 {strides = array<i32>} : memref<64x128xf32, #tpu.memory_space<vmem>>, vector<64x128xf32>,
    return
  }
  func.func @transform_0(%arg0: i32) -> (i32, i32) {
    %c0_i32 = arith.constant 0 : i32
    %c0_i32_0 = arith.constant 0 : i32
    return %arg0, %c0_i32 : i32, i32
  }
  func.func @transform_1(%arg0: i32) -> (i32, i32) {
    %c0_i32 = arith.constant 0 : i32
    %c0_i32_0 = arith.constant 0 : i32
    %c0_i32_1 = arith.constant 0 : i32
    return %c0_i32, %c0_i32_0 : i32, i32
  }
  func.func @transform_2(%arg0: i32) -> (i32, i32) {
    %c0_i32 = arith.constant 0 : i32
    %c0_i32_0 = arith.constant 0 : i32
    %c0_i32_1 = arith.constant 0 : i32
    return %c0_i32, %c0_i32_0 : i32, i32
  }
  func.func @transform_3(%arg0: i32) -> (i32, i32) {
    %c0_i32 = arith.constant 0 : i32
    %c0_i32_0 = arith.constant 0 : i32
    %c0_i32_1 = arith.constant 0 : i32
    return %c0_i32, %c0_i32_0 : i32, i32
  }
  func.func @transform_4(%arg0: i32) -> (i32, i32) {
    %c0_i32 = arith.constant 0 : i32
    %c0_i32_0 = arith.constant 0 : i32
    %c0_i32_1 = arith.constant 0 : i32
    return %c0_i32, %c0_i32_0 : i32, i32
  }
  func.func @transform_5(%arg0: i32) -> (i32, i32) {
    %c0_i32 = arith.constant 0 : i32
    %c0_i32_0 = arith.constant 0 : i32
    return %arg0, %c0_i32 : i32, i32
  }
}

</mosaic_0001>

<llo_original>
// kernel: tpu_custom_call.1
$region0: #{tpu_custom_call.1}
  #allocation0 [shape = 'u32[]', space=smem, size = 0x4, offset = 0x4, fixed_abs, tag = 'smem constant byte address 0x4 - core index']
  #allocation1 [shape = 'u32[144,128]{1,0:T(1,128)}', space=vmem, size = 0x12000, scoped, tag = 'internal scratch']
  %s0 = inlined_call_operand.vmem [shape: bf16[64,32], index: 0, kind: input, shape index: {}]
  %s1 = inlined_call_operand.vmem [shape: bf16[32,64], index: 1, kind: input, shape index: {}]
  %s2 = inlined_call_operand.vmem [shape: f32[1,64], index: 2, kind: input, shape index: {}]
  %s3 = inlined_call_operand.vmem [shape: bf16[64,128], index: 3, kind: input, shape index: {}]
  %s4 = inlined_call_operand.vmem [shape: f32[1,128], index: 4, kind: input, shape index: {}]
  %s5 = inlined_call_operand.hbm [shape: f32[64,128], index: 5, kind: output, shape index: {}]
  %s6 = sld [smem:[#allocation0]]
  $region30: #{tpu_custom_call.1} parent=0
    _
  %s8 = ssub.s32 1, %s6
  %s9 = scalar_select 0, %s8, %s6
  $region1: #{tpu_custom_call.1} parent=0
    #allocation2 [shape = 'u8[32768]{0}', space=vmem, size = 0x8000, scoped, tag = 'output window, operand 0, single buffered']
    #allocation3 [shape = 's32[1]{0}', space=sflag, size = 0x4, scoped, tag = 'scoped memory for tpu_custom_call.1']
    %10 = vsyncpa [#allocation3], 0
    // Predicated region
    $region2: #{tpu_custom_call.1} parent=1 // pred_check
      _
    $region3: #{tpu_custom_call.1} parent=1 // pred_check_branch
      %12 = sbr.rel (0) target = $region5
    $region4: #{tpu_custom_call.1} parent=1 // pred_region
      _
    $region5: #{tpu_custom_call.1} parent=1 // pred_fallthru
      _
    // Predicated region
    $region6: #{tpu_custom_call.1} parent=1 // pred_check
      _
    $region7: #{tpu_custom_call.1} parent=1 // pred_check_branch
      %14 = sbr.rel (0) target = $region9
    $region8: #{tpu_custom_call.1} parent=1 // pred_region
      _
    $region9: #{tpu_custom_call.1} parent=1 // pred_fallthru
      _
    // Predicated region
    $region10: #{tpu_custom_call.1} parent=1 // pred_check
      _
    $region11: #{tpu_custom_call.1} parent=1 // pred_check_branch
      %16 = sbr.rel (0) target = $region13
    $region12: #{tpu_custom_call.1} parent=1 // pred_region
      _
    $region13: #{tpu_custom_call.1} parent=1 // pred_fallthru
      _
    // Predicated region
    $region14: #{tpu_custom_call.1} parent=1 // pred_check
      _
    $region15: #{tpu_custom_call.1} parent=1 // pred_check_branch
      %18 = sbr.rel (0) target = $region17
    $region16: #{tpu_custom_call.1} parent=1 // pred_region
      _
    $region17: #{tpu_custom_call.1} parent=1 // pred_fallthru
      _
    // Predicated region
    $region18: #{tpu_custom_call.1} parent=1 // pred_check
      _
    $region19: #{tpu_custom_call.1} parent=1 // pred_check_branch
      %20 = sbr.rel (0) target = $region21
    $region20: #{tpu_custom_call.1} parent=1 // pred_region
      _
    $region21: #{tpu_custom_call.1} parent=1 // pred_fallthru
      _
    %v22 = vld [vmem:[%s0] sm:$0xf]
    %v23 = vld [vmem:[%s0 + $0x4] sm:$0xf]
    %v24 = vld [vmem:[%s0 + $0x8] sm:$0xf]
    %v25 = vld [vmem:[%s0 + $0xc] sm:$0xf]
    %v26 = vld [vmem:[%s0 + $0x10] sm:$0xf]
    %v27 = vld [vmem:[%s0 + $0x14] sm:$0xf]
    %v28 = vld [vmem:[%s0 + $0x18] sm:$0xf]
    %v29 = vld [vmem:[%s0 + $0x1c] sm:$0xf]
    %v30 = vld [vmem:[%s1] sm:$0xf]
    %v31 = vld [vmem:[%s1 + $0x4] sm:$0xf]
    %v32 = vld [vmem:[%s1 + $0x8] sm:$0xf]
    %v33 = vld [vmem:[%s1 + $0xc] sm:$0xf]
    %v34 = vld [vmem:[%s2] sm:$0x1]
    %v36 = vlaneseq
    %v37 = vshrl.u32 %v36, 7
    %v38 = vsub.s32 0, %v37
    %v39 = vrot.slane %v34, %v38
    %v49 = vunpack.c.l.b16 %v22
    %v50 = vunpack.c.l.b16 %v23
    %v51 = vunpack.c.l.b16 %v24
    %v52 = vunpack.c.l.b16 %v25
    %v53 = vunpack.c.l.b16 %v26
    %v54 = vunpack.c.l.b16 %v27
    %v55 = vunpack.c.l.b16 %v28
    %v56 = vunpack.c.l.b16 %v29
    %v57 = vpack.c.b16 %v50, %v49
    %v58 = vpack.c.b16 %v52, %v51
    %v59 = vpack.c.b16 %v54, %v53
    %v60 = vpack.c.b16 %v56, %v55
    %v65 = vunpack.c.l.b16 %v30
    %v66 = vunpack.c.l.b16 %v31
    %v67 = vunpack.c.l.b16 %v32
    %v68 = vunpack.c.l.b16 %v33
    %v69 = vpack.c.b16 %v66, %v65
    %v70 = vpack.c.b16 %v68, %v67
    %vm73 = vcmask 261120
    %v75 = vsel %vm73, %v57, 0
    %v78 = vsel %vm73, %v58, 0
    %v81 = vsel %vm73, %v59, 0
    %v84 = vsel %vm73, %v60, 0
    %86 = vmatprep.subr.bf16.mxu0 0
    %87 = vmatpush1.bf16.msra.mxu0 %v69
    %88 = vmatprep.subr.bf16.mxu0 0
    %89 = vmatpush1.bf16.msra.mxu0 %v70
    %90 = vmatprep.subr.bf16.mxu0 0
    %91 = vmatpush1.bf16.msra.mxu0 0
    %92 = vmatprep.subr.bf16.mxu0 0
    %93 = vmatpush1.bf16.msra.mxu0 0
    %94 = vmatprep.subr.bf16.mxu0 0
    %95 = vmatpush1.bf16.msra.mxu0 0
    %96 = vmatprep.subr.bf16.mxu0 0
    %97 = vmatpush1.bf16.msra.mxu0 0
    %98 = vmatprep.subr.bf16.mxu0 0
    %99 = vmatpush1.bf16.msra.mxu0 0
    %100 = vmatprep.subr.bf16.mxu0 0
    %101 = vmatpush1.bf16.msra.mxu0 0
    %102 = vmatprep.subr.bf16.mxu0 0
    %103 = vmatpush1.bf16.msra.mxu0 0
    %104 = vmatprep.subr.bf16.mxu0 0
    %105 = vmatpush1.bf16.msra.mxu0 0
    %106 = vmatprep.subr.bf16.mxu0 0
    %107 = vmatpush1.bf16.msra.mxu0 0
    %108 = vmatprep.subr.bf16.mxu0 0
    %109 = vmatpush1.bf16.msra.mxu0 0
    %110 = vmatprep.subr.bf16.mxu0 0
    %111 = vmatpush1.bf16.msra.mxu0 0
    %112 = vmatprep.subr.bf16.mxu0 0
    %113 = vmatpush1.bf16.msra.mxu0 0
    %114 = vmatprep.subr.bf16.mxu0 0
    %115 = vmatpush1.bf16.msra.mxu0 0
    %116 = vmatprep.subr.bf16.mxu0 0
    %117 = vmatpush1.bf16.msra.mxu0 0
    %118 = vmatprep.mubr.bf16.mxu0 0
    %119 = vmatmul.mubr.bf16.gmra.mrb[0].mxu0 %v75
    %v120 = vpop.f32.mrb[0].mxu0
    %v121 = vadd.f32 %v39, %v120
    %v122 = vpop.f32.mrb[0].mxu0
    %v123 = vpop.f32.mrb[0].mxu0
    %v124 = vadd.f32 %v39, %v123
    %v125 = vpop.f32.mrb[0].mxu0
    %126 = vmatprep.mubr.bf16.mxu0 0
    %127 = vmatmul.mubr.bf16.gmra.mrb[0].mxu0 %v78
    %v128 = vpop.f32.mrb[0].mxu0
    %v129 = vadd.f32 %v39, %v128
    %v130 = vpop.f32.mrb[0].mxu0
    %v131 = vpop.f32.mrb[0].mxu0
    %v132 = vadd.f32 %v39, %v131
    %v133 = vpop.f32.mrb[0].mxu0
    %134 = vmatprep.mubr.bf16.mxu0 0
    %135 = vmatmul.mubr.bf16.gmra.mrb[0].mxu0 %v81
    %v136 = vpop.f32.mrb[0].mxu0
    %v137 = vadd.f32 %v39, %v136
    %v138 = vpop.f32.mrb[0].mxu0
    %v139 = vpop.f32.mrb[0].mxu0
    %v140 = vadd.f32 %v39, %v139
    %v141 = vpop.f32.mrb[0].mxu0
    %142 = vmatprep.mubr.bf16.mxu0 0
    %143 = vmatmul.mubr.bf16.gmra.mrb[0].mxu0 %v84
    %v144 = vpop.f32.mrb[0].mxu0
    %v145 = vadd.f32 %v39, %v144
    %v146 = vpop.f32.mrb[0].mxu0
    %v147 = vpop.f32.mrb[0].mxu0
    %v148 = vadd.f32 %v39, %v147
    %v149 = vpop.f32.mrb[0].mxu0
    %150 = vdwg.mxu0
    %v151 = vmax.f32 %v121, 0.0
    %v152 = vmax.f32 %v124, 0.0
    %v153 = vmax.f32 %v129, 0.0
    %v154 = vmax.f32 %v132, 0.0
    %v155 = vmax.f32 %v137, 0.0
    %v156 = vmax.f32 %v140, 0.0
    %v157 = vmax.f32 %v145, 0.0
    %v158 = vmax.f32 %v148, 0.0
    %v159 = vpack.c.bf16 %v152, %v151
    %v160 = vpack.c.bf16 %v154, %v153
    %v161 = vpack.c.bf16 %v156, %v155
    %v162 = vpack.c.bf16 %v158, %v157
    %v163 = vld [vmem:[%s3] sm:$0xf]
    %v164 = vld [vmem:[%s3 + $0x4] sm:$0xf]
    %v165 = vld [vmem:[%s3 + $0x8] sm:$0xf]
    %v166 = vld [vmem:[%s3 + $0xc] sm:$0xf]
    %v167 = vld [vmem:[%s3 + $0x10] sm:$0xf]
    %v168 = vld [vmem:[%s3 + $0x14] sm:$0xf]
    %v169 = vld [vmem:[%s3 + $0x18] sm:$0xf]
    %v170 = vld [vmem:[%s3 + $0x1c] sm:$0xf]
    %v171 = vld [vmem:[%s4] sm:$0x1]
    %v173 = vlaneseq
    %v174 = vshrl.u32 %v173, 7
    %v175 = vsub.s32 0, %v174
    %v176 = vrot.slane %v171, %v175
    %v186 = vunpack.c.l.b16 %v163
    %v187 = vunpack.c.l.b16 %v164
    %v188 = vunpack.c.l.b16 %v165
    %v189 = vunpack.c.l.b16 %v166
    %v190 = vunpack.c.l.b16 %v167
    %v191 = vunpack.c.l.b16 %v168
    %v192 = vunpack.c.l.b16 %v169
    %v193 = vunpack.c.l.b16 %v170
    %v194 = vpack.c.b16 %v187, %v186
    %v195 = vpack.c.b16 %v189, %v188
    %v196 = vpack.c.b16 %v191, %v190
    %v197 = vpack.c.b16 %v193, %v192
    %vm202 = vcmask 523264
    %v204 = vsel %vm202, %v159, 0
    %v207 = vsel %vm202, %v160, 0
    %v210 = vsel %vm202, %v161, 0
    %v213 = vsel %vm202, %v162, 0
    %215 = vmatprep.subr.bf16.mxu0 0
    %216 = vmatpush1.bf16.msra.mxu0 %v194
    %217 = vmatprep.subr.bf16.mxu0 0
    %218 = vmatpush1.bf16.msra.mxu0 %v195
    %219 = vmatprep.subr.bf16.mxu0 0
    %220 = vmatpush1.bf16.msra.mxu0 %v196
    %221 = vmatprep.subr.bf16.mxu0 0
    %222 = vmatpush1.bf16.msra.mxu0 %v197
    %223 = vmatprep.subr.bf16.mxu0 0
    %224 = vmatpush1.bf16.msra.mxu0 0
    %225 = vmatprep.subr.bf16.mxu0 0
    %226 = vmatpush1.bf16.msra.mxu0 0
    %227 = vmatprep.subr.bf16.mxu0 0
    %228 = vmatpush1.bf16.msra.mxu0 0
    %229 = vmatprep.subr.bf16.mxu0 0
    %230 = vmatpush1.bf16.msra.mxu0 0
    %231 = vmatprep.subr.bf16.mxu0 0
    %232 = vmatpush1.bf16.msra.mxu0 0
    %233 = vmatprep.subr.bf16.mxu0 0
    %234 = vmatpush1.bf16.msra.mxu0 0
    %235 = vmatprep.subr.bf16.mxu0 0
    %236 = vmatpush1.bf16.msra.mxu0 0
    %237 = vmatprep.subr.bf16.mxu0 0
    %238 = vmatpush1.bf16.msra.mxu0 0
    %239 = vmatprep.subr.bf16.mxu0 0
    %240 = vmatpush1.bf16.msra.mxu0 0
    %241 = vmatprep.subr.bf16.mxu0 0
    %242 = vmatpush1.bf16.msra.mxu0 0
    %243 = vmatprep.subr.bf16.mxu0 0
    %244 = vmatpush1.bf16.msra.mxu0 0
    %245 = vmatprep.subr.bf16.mxu0 0
    %246 = vmatpush1.bf16.msra.mxu0 0
    %247 = vmatprep.mubr.bf16.mxu0 0
    %248 = vmatmul.mubr.bf16.gmra.mrb[0].mxu0 %v204
    %v249 = vpop.f32.mrb[0].mxu0
    %v250 = vadd.f32 %v176, %v249
    %v251 = vpop.f32.mrb[0].mxu0
    %v252 = vpop.f32.mrb[0].mxu0
    %v253 = vadd.f32 %v176, %v252
    %v254 = vpop.f32.mrb[0].mxu0
    %255 = vmatprep.mubr.bf16.mxu0 0
    %256 = vmatmul.mubr.bf16.gmra.mrb[0].mxu0 %v207
    %v257 = vpop.f32.mrb[0].mxu0
    %v258 = vadd.f32 %v176, %v257
    %v259 = vpop.f32.mrb[0].mxu0
    %v260 = vpop.f32.mrb[0].mxu0
    %v261 = vadd.f32 %v176, %v260
    %v262 = vpop.f32.mrb[0].mxu0
    %263 = vmatprep.mubr.bf16.mxu0 0
    %264 = vmatmul.mubr.bf16.gmra.mrb[0].mxu0 %v210
    %v265 = vpop.f32.mrb[0].mxu0
    %v266 = vadd.f32 %v176, %v265
    %v267 = vpop.f32.mrb[0].mxu0
    %v268 = vpop.f32.mrb[0].mxu0
    %v269 = vadd.f32 %v176, %v268
    %v270 = vpop.f32.mrb[0].mxu0
    %271 = vmatprep.mubr.bf16.mxu0 0
    %272 = vmatmul.mubr.bf16.gmra.mrb[0].mxu0 %v213
    %v273 = vpop.f32.mrb[0].mxu0
    %v274 = vadd.f32 %v176, %v273
    %v275 = vpop.f32.mrb[0].mxu0
    %v276 = vpop.f32.mrb[0].mxu0
    %v277 = vadd.f32 %v176, %v276
    %v278 = vpop.f32.mrb[0].mxu0
    %279 = vdwg.mxu0
    %v280 = vmax.f32 %v250, 0.0
    %v281 = vmax.f32 %v253, 0.0
    %v282 = vmax.f32 %v258, 0.0
    %v283 = vmax.f32 %v261, 0.0
    %v284 = vmax.f32 %v266, 0.0
    %v285 = vmax.f32 %v269, 0.0
    %v286 = vmax.f32 %v274, 0.0
    %v287 = vmax.f32 %v277, 0.0
    %288 = vst [vmem:[#allocation2] sm:$0xff] %v280
    %289 = vst [vmem:[#allocation2 + $0x8] sm:$0xff] %v281
    %290 = vst [vmem:[#allocation2 + $0x10] sm:$0xff] %v282
    %291 = vst [vmem:[#allocation2 + $0x18] sm:$0xff] %v283
    %292 = vst [vmem:[#allocation2 + $0x20] sm:$0xff] %v284
    %293 = vst [vmem:[#allocation2 + $0x28] sm:$0xff] %v285
    %294 = vst [vmem:[#allocation2 + $0x30] sm:$0xff] %v286
    %295 = vst [vmem:[#allocation2 + $0x38] sm:$0xff] %v287
    // Predicated region
    $region22: #{tpu_custom_call.1} parent=1 // pred_check
      _
    $region23: #{tpu_custom_call.1} parent=1 // pred_check_branch
      %297 = sbr.rel (0) target = $region25
    $region24: #{tpu_custom_call.1} parent=1 // pred_region
      %s299 = ssub.s32 1024, 1024
      %300 = vsyncadd [#allocation3], %s299
      %s301 = sshll.u32 [#allocation2], 4
      %s302 = int_to_ptr.vmem [resolvable:$true] %s301
      %307 = dma.vmem_to_hbm [thread:$0]  %s302, 1024, %s5, [#allocation3], 128, 128, 8
    $region25: #{tpu_custom_call.1} parent=1 // pred_fallthru
      _
    // Predicated region
    $region26: #{tpu_custom_call.1} parent=1 // pred_check
      _
    $region27: #{tpu_custom_call.1} parent=1 // pred_check_branch
      %309 = sbr.rel (0) target = $region29
    $region28: #{tpu_custom_call.1} parent=1 // pred_region
      %310 = dma.done [#allocation3], 1024
    $region29: #{tpu_custom_call.1} parent=1 // pred_fallthru
      _
    %311 = vsyncpa [#allocation3], 1

</llo_original>
